<compile_context>
chip_gen: v7x
topology: tpu7x:2x2x1
jax: 0.10.0
libtpu: 0.0.40
codegen_flags: <defaults>
</compile_context>

<pallas_src>
import functools

import jax
import jax.numpy as jnp
from jax import lax
from jax.experimental import pallas as pl
from jax.experimental.pallas import tpu as pltpu

DROPOUT_P = 0.1
_KEEP_SCALE = 1.0 / (1.0 - DROPOUT_P)
_DROP_THRESHOLD = int(round(DROPOUT_P * (1 << 32)))  # u32 threshold, P(drop)=0.1


def _mix32(x):
    # murmur3 fmix32 finalizer: good avalanche, pure u32 VPU ops.
    x = x ^ (x >> 16)
    x = x * jnp.uint32(0x85EBCA6B)
    x = x ^ (x >> 13)
    x = x * jnp.uint32(0xC2B2AE35)
    x = x ^ (x >> 16)
    return x


def _attention_kernel(seed_ref, q_ref, k_ref, v_ref, o_ref, *, scale):
    # q_ref / k_ref / v_ref / o_ref: (G, S, D) blocks in VMEM; seed_ref: SMEM (1,)
    G, S, D = q_ref.shape

    # Fold the d**0.25 scale into q (weak-typed scalar keeps native dtype).
    q = q_ref[...] * scale                       # (G, S, D)
    k = k_ref[...]                               # (G, S, D)
    v = v_ref[...]                               # (G, S, D)

    # scores: contract over D (no explicit transpose), f32 accumulation.
    s = jnp.einsum("gqd,gkd->gqk", q, k,
                   preferred_element_type=jnp.float32)        # (G, S, S) f32

    # numerically stable softmax over the key axis
    m = jnp.max(s, axis=-1, keepdims=True)
    e = jnp.exp(s - m)
    l = jnp.sum(e, axis=-1, keepdims=True)
    # fold the inverted-dropout 1/(1-p) rescale into the reciprocal broadcast
    inv = pl.reciprocal(l, approx=True) * jnp.float32(_KEEP_SCALE)  # (G, S, 1)

    # Stateless counter-based dropout mask: hash(seed, global element index).
    h0 = pl.program_id(0) * G                    # first head handled by this step
    gi = lax.broadcasted_iota(jnp.int32, (G, S, S), 0)
    qi = lax.broadcasted_iota(jnp.int32, (G, S, S), 1)
    ki = lax.broadcasted_iota(jnp.int32, (G, S, S), 2)
    ctr = (((h0 + gi) * S + qi) * S + ki).astype(jnp.uint32)
    seed_u = seed_ref[0].astype(jnp.uint32)
    bits = _mix32(ctr * jnp.uint32(0x9E3779B9) + seed_u * jnp.uint32(0x7FEB352D))
    keep = bits >= jnp.uint32(_DROP_THRESHOLD)   # P(keep) = 1 - DROPOUT_P

    p = jnp.where(keep, e * inv, jnp.float32(0.0))             # (G, S, S) f32

    # p @ v, batched over heads; feed the MXU in v's native dtype.
    out = jnp.einsum("gqk,gkd->gqd", p.astype(v.dtype), v,
                     preferred_element_type=jnp.float32)       # (G, S, D)
    o_ref[...] = out.astype(o_ref.dtype)


def _pick_group(bh, d):
    """Largest divisor of BH with G*D <= 128 (fills lanes / MXU N dim)."""
    target = max(1, 128 // max(d, 1))
    best = 1
    for cand in range(1, min(bh, target) + 1):
        if bh % cand == 0:
            best = cand
    return best


@jax.jit
def attention(q, k, v, seed):
    """q, k, v: (B, H, S, D). Returns (output, None, None) like the torch module."""
    B, H, S, D = q.shape
    BH = B * H
    G = _pick_group(BH, D)

    qf = q.reshape(BH, S, D)
    kf = k.reshape(BH, S, D)
    vf = v.reshape(BH, S, D)
    seed_arr = jnp.asarray([seed], dtype=jnp.int32)

    kernel = functools.partial(_attention_kernel, scale=float(D) ** 0.25)
    blk = lambda i, seed_ref: (i, 0, 0)

    out = pl.pallas_call(
        kernel,
        out_shape=jax.ShapeDtypeStruct((BH, S, D), q.dtype),
        grid_spec=pltpu.PrefetchScalarGridSpec(
            num_scalar_prefetch=1,
            grid=(BH // G,),
            in_specs=[
                pl.BlockSpec((G, S, D), blk),
                pl.BlockSpec((G, S, D), blk),
                pl.BlockSpec((G, S, D), blk),
            ],
            out_specs=pl.BlockSpec((G, S, D), blk),
        ),
        compiler_params=pltpu.CompilerParams(
            # Stateless (hash-based) dropout -> grid steps are order-independent,
            # so the head axis can be sharded across v7x's two TensorCores.
            dimension_semantics=("parallel",),
        ),
    )(seed_arr, qf, kf, vf)

    return out.reshape(B, H, S, D), None, None


if __name__ == "__main__":
    key = jax.random.PRNGKey(0)
    kq, kk, kv = jax.random.split(key, 3)

    B, H, S, D = 2, 2, 8, 32
    q = jax.random.normal(kq, (B, H, S, D), dtype=jnp.float32)
    k = jax.random.normal(kk, (B, H, S, D), dtype=jnp.float32)
    v = jax.random.normal(kv, (B, H, S, D), dtype=jnp.float32)

    out, _, _ = attention(q, k, v, seed=0)
    jax.block_until_ready(out)

    assert out.shape == (B, H, S, D)
    assert bool(jnp.all(jnp.isfinite(out)))
    print("KERNEL_OK")
</pallas_src>

<mosaic_0001>
module attributes {stable_mosaic.version = 11 : i64} {
  func.func @_attention_kernel(%arg0: i32, %arg1: memref<1xi32, #tpu.memory_space<smem>>, %arg2: memref<4x8x32xf32, #tpu.memory_space<vmem>>, %arg3: memref<4x8x32xf32, #tpu.memory_space<vmem>>, %arg4: memref<4x8x32xf32, #tpu.memory_space<vmem>>, %arg5: memref<4x8x32xf32, #tpu.memory_space<vmem>>) attributes {dimension_semantics = [#tpu.dimension_semantics<parallel>], iteration_bounds = array<i64: 1>, scalar_prefetch = 1 : i64, scratch_operands = 0 : i64, tpu.core_type = #tpu.core_type<tc>, window_params = [{transform_indices = @transform_0, window_bounds = array<i64: 4, 8, 32>}, {transform_indices = @transform_1, window_bounds = array<i64: 4, 8, 32>}, {transform_indices = @transform_2, window_bounds = array<i64: 4, 8, 32>}, {transform_indices = @transform_3, window_bounds = array<i64: 4, 8, 32>}]} {
    %c0 = arith.constant 0 : index
    %c0_0 = arith.constant 0 : index
    %c0_1 = arith.constant 0 : index
    %0 = vector.load %arg2[%c0, %c0_0, %c0_1] : memref<4x8x32xf32, #tpu.memory_space<vmem>>, vector<4x8x32xf32>
    %cst = arith.constant 2.37841415 : f32
    %1 = vector.broadcast %cst : f32 to vector<4x8x32xf32>
    %2 = arith.mulf %0, %1 : vector<4x8x32xf32>
    %c0_2 = arith.constant 0 : index
    %c0_3 = arith.constant 0 : index
    %c0_4 = arith.constant 0 : index
    %3 = vector.load %arg3[%c0_2, %c0_3, %c0_4] : memref<4x8x32xf32, #tpu.memory_space<vmem>>, vector<4x8x32xf32>
    %c0_5 = arith.constant 0 : index
    %c0_6 = arith.constant 0 : index
    %c0_7 = arith.constant 0 : index
    %4 = vector.load %arg4[%c0_5, %c0_6, %c0_7] : memref<4x8x32xf32, #tpu.memory_space<vmem>>, vector<4x8x32xf32>
    "tpu.trace_start"() <{level = 10 : i32, message = "gqd,gkd->gqk"}> : () -> ()
    %cst_8 = arith.constant dense<0.000000e+00> : vector<4x8x8xf32>
    %5 = tpu.matmul %2, %3, %cst_8 {dimension_numbers = #tpu.dot_dimension_numbers<[2], [2], [1], [1], [0, 0, 0, 1, 1, 1], [0], [0]>} : vector<4x8x32xf32>, vector<4x8x32xf32>, vector<4x8x8xf32> -> vector<4x8x8xf32>
    "tpu.trace_stop"() : () -> ()
    %cst_9 = arith.constant dense<0xFF800000> : vector<4x8xf32>
    %6 = vector.multi_reduction <maximumf>, %5, %cst_9 [2] : vector<4x8x8xf32> to vector<4x8xf32>
    %7 = vector.shape_cast %6 : vector<4x8xf32> to vector<4x8x1xf32>
    %8 = vector.broadcast %7 : vector<4x8x1xf32> to vector<4x8x8xf32>
    %9 = arith.subf %5, %8 : vector<4x8x8xf32>
    %10 = math.exp %9 : vector<4x8x8xf32>
    %cst_10 = arith.constant dense<0.000000e+00> : vector<4x8xf32>
    %11 = vector.multi_reduction <add>, %10, %cst_10 [2] : vector<4x8x8xf32> to vector<4x8xf32>
    %12 = vector.shape_cast %11 : vector<4x8xf32> to vector<4x8x1xf32>
    %13 = tpu.reciprocal %12 {approx = true} : vector<4x8x1xf32> -> vector<4x8x1xf32>
    %cst_11 = arith.constant 1.11111116 : f32
    %14 = vector.broadcast %cst_11 : f32 to vector<4x8x1xf32>
    %15 = arith.mulf %13, %14 : vector<4x8x1xf32>
    %c4_i32 = arith.constant 4 : i32
    %16 = arith.muli %arg0, %c4_i32 : i32
    %17 = tpu.iota {dimensions = array<i32: 0>} : vector<4x8x8xi32>
    %18 = tpu.iota {dimensions = array<i32: 1>} : vector<4x8x8xi32>
    %19 = tpu.iota {dimensions = array<i32: 2>} : vector<4x8x8xi32>
    %20 = vector.broadcast %16 : i32 to vector<4x8x8xi32>
    %21 = arith.addi %20, %17 : vector<4x8x8xi32>
    %c8_i32 = arith.constant 8 : i32
    %22 = vector.broadcast %c8_i32 : i32 to vector<4x8x8xi32>
    %23 = arith.muli %21, %22 : vector<4x8x8xi32>
    %24 = arith.addi %23, %18 : vector<4x8x8xi32>
    %c8_i32_12 = arith.constant 8 : i32
    %25 = vector.broadcast %c8_i32_12 : i32 to vector<4x8x8xi32>
    %26 = arith.muli %24, %25 : vector<4x8x8xi32>
    %27 = arith.addi %26, %19 : vector<4x8x8xi32>
    %c0_13 = arith.constant 0 : index
    %28 = memref.load %arg1[%c0_13] : memref<1xi32, #tpu.memory_space<smem>>
    %c-1640531527_i32 = arith.constant -1640531527 : i32
    %29 = vector.broadcast %c-1640531527_i32 : i32 to vector<4x8x8xi32>
    %30 = arith.muli %27, %29 : vector<4x8x8xi32>
    %c2146121005_i32 = arith.constant 2146121005 : i32
    %31 = arith.muli %28, %c2146121005_i32 : i32
    %32 = vector.broadcast %31 : i32 to vector<4x8x8xi32>
    %33 = arith.addi %30, %32 : vector<4x8x8xi32>
    %c16_i32 = arith.constant 16 : i32
    %34 = vector.broadcast %c16_i32 : i32 to vector<4x8x8xi32>
    %35 = arith.shrui %33, %34 : vector<4x8x8xi32>
    %36 = arith.xori %33, %35 : vector<4x8x8xi32>
    %c-2048144789_i32 = arith.constant -2048144789 : i32
    %37 = vector.broadcast %c-2048144789_i32 : i32 to vector<4x8x8xi32>
    %38 = arith.muli %36, %37 : vector<4x8x8xi32>
    %c13_i32 = arith.constant 13 : i32
    %39 = vector.broadcast %c13_i32 : i32 to vector<4x8x8xi32>
    %40 = arith.shrui %38, %39 : vector<4x8x8xi32>
    %41 = arith.xori %38, %40 : vector<4x8x8xi32>
    %c-1028477387_i32 = arith.constant -1028477387 : i32
    %42 = vector.broadcast %c-1028477387_i32 : i32 to vector<4x8x8xi32>
    %43 = arith.muli %41, %42 : vector<4x8x8xi32>
    %c16_i32_14 = arith.constant 16 : i32
    %44 = vector.broadcast %c16_i32_14 : i32 to vector<4x8x8xi32>
    %45 = arith.shrui %43, %44 : vector<4x8x8xi32>
    %46 = arith.xori %43, %45 : vector<4x8x8xi32>
    %c429496730_i32 = arith.constant 429496730 : i32
    %47 = vector.broadcast %c429496730_i32 : i32 to vector<4x8x8xi32>
    %48 = arith.cmpi uge, %46, %47 : vector<4x8x8xi32>
    %49 = vector.broadcast %15 : vector<4x8x1xf32> to vector<4x8x8xf32>
    %50 = arith.mulf %10, %49 : vector<4x8x8xf32>
    %cst_15 = arith.constant 0.000000e+00 : f32
    %51 = vector.broadcast %cst_15 : f32 to vector<4x8x8xf32>
    %52 = arith.select %48, %50, %51 : vector<4x8x8xi1>, vector<4x8x8xf32>
    "tpu.trace_start"() <{level = 10 : i32, message = "gqk,gkd->gqd"}> : () -> ()
    %cst_16 = arith.constant dense<0.000000e+00> : vector<4x8x32xf32>
    %53 = tpu.matmul %52, %4, %cst_16 {dimension_numbers = #tpu.dot_dimension_numbers<[2], [1], [1], [2], [0, 0, 0, 1, 1, 2], [0], [0]>} : vector<4x8x8xf32>, vector<4x8x32xf32>, vector<4x8x32xf32> -> vector<4x8x32xf32>
    "tpu.trace_stop"() : () -> ()
    %c0_17 = arith.constant 0 : index
    %c0_18 = arith.constant 0 : index
    %c0_19 = arith.constant 0 : index
    %54 = vector.load %arg5[%c0_17, %c0_18, %c0_19] : memref<4x8x32xf32, #tpu.memory_space<vmem>>, vector<4x8x32xf32>
    tpu.vector_store %arg5[%c0_17, %c0_18, %c0_19], %53 {strides = array<i32>} : memref<4x8x32xf32, #tpu.memory_space<vmem>>, vector<4x8x32xf32>,
    return
  }
  func.func @transform_0(%arg0: i32, %arg1: memref<1xi32, #tpu.memory_space<smem>>) -> (i32, i32, i32) {
    %c0_i32 = arith.constant 0 : i32
    %c0_i32_0 = arith.constant 0 : i32
    %c0_i32_1 = arith.constant 0 : i32
    return %arg0, %c0_i32, %c0_i32_0 : i32, i32, i32
  }
  func.func @transform_1(%arg0: i32, %arg1: memref<1xi32, #tpu.memory_space<smem>>) -> (i32, i32, i32) {
    %c0_i32 = arith.constant 0 : i32
    %c0_i32_0 = arith.constant 0 : i32
    %c0_i32_1 = arith.constant 0 : i32
    return %arg0, %c0_i32, %c0_i32_0 : i32, i32, i32
  }
  func.func @transform_2(%arg0: i32, %arg1: memref<1xi32, #tpu.memory_space<smem>>) -> (i32, i32, i32) {
    %c0_i32 = arith.constant 0 : i32
    %c0_i32_0 = arith.constant 0 : i32
    %c0_i32_1 = arith.constant 0 : i32
    return %arg0, %c0_i32, %c0_i32_0 : i32, i32, i32
  }
  func.func @transform_3(%arg0: i32, %arg1: memref<1xi32, #tpu.memory_space<smem>>) -> (i32, i32, i32) {
    %c0_i32 = arith.constant 0 : i32
    %c0_i32_0 = arith.constant 0 : i32
    %c0_i32_1 = arith.constant 0 : i32
    return %arg0, %c0_i32, %c0_i32_0 : i32, i32, i32
  }
}

</mosaic_0001>

<llo_original>
// kernel: attention.1
$region0: #{attention.1}
  #allocation0 [shape = 'u32[]', space=smem, size = 0x4, offset = 0x4, fixed_abs, tag = 'smem constant byte address 0x4 - core index']
  #allocation1 [shape = 'u32[144,128]{1,0:T(1,128)}', space=vmem, size = 0x12000, scoped, tag = 'internal scratch']
  #allocation2 [shape = 's32[1]{0}', space=sflag, size = 0x4, scoped, tag = 'scoped memory for attention.1']
  #allocation3 [shape = 's32[1]{0:T(128)S(6)}', space=smem, size = 0x200, scoped, tag = 'prefetched SMEM operand 0']
  %s0 = inlined_call_operand.<no memory space> [shape: s32[1], index: 0, kind: input, shape index: {}]
  %s1 = inlined_call_operand.hbm [shape: f32[4,8,32], index: 1, kind: input, shape index: {}]
  %s2 = inlined_call_operand.hbm [shape: f32[4,8,32], index: 2, kind: input, shape index: {}]
  %s3 = inlined_call_operand.hbm [shape: f32[4,8,32], index: 3, kind: input, shape index: {}]
  %s4 = inlined_call_operand.hbm [shape: f32[4,8,32], index: 4, kind: output, shape index: {}]
  %s5 = sld [smem:[#allocation0]]
  $region34: #{attention.1} parent=0
    _
  %s7 = ssub.s32 1, %s5
  %s8 = scalar_select 0, %s7, %s5
  %9 = sst [smem:[#allocation3]] %s0
  $region1: #{attention.1} parent=0
    #allocation4 [shape = 'u8[16384]{0}', space=vmem, size = 0x4000, scoped, tag = 'input window, operand 1, single buffered']
    #allocation5 [shape = 's32[1]{0}', space=sflag, size = 0x4, scoped, tag = 'scoped memory for attention.1']
    #allocation6 [shape = 's32[1]{0}', space=sflag, size = 0x4, scoped, tag = 'scoped memory for attention.1']
    #allocation7 [shape = 'u8[16384]{0}', space=vmem, size = 0x4000, scoped, tag = 'input window, operand 2, single buffered']
    #allocation8 [shape = 's32[1]{0}', space=sflag, size = 0x4, scoped, tag = 'scoped memory for attention.1']
    #allocation9 [shape = 'u8[16384]{0}', space=vmem, size = 0x4000, scoped, tag = 'input window, operand 3, single buffered']
    #allocation10 [shape = 'u8[16384]{0}', space=vmem, size = 0x4000, scoped, tag = 'output window, operand 0, single buffered']
    %10 = vsyncpa [#allocation5], 0
    %11 = vsyncpa [#allocation8], 0
    %12 = vsyncpa [#allocation6], 0
    // Predicated region
    $region2: #{attention.1} parent=1 // pred_check
      _
    $region3: #{attention.1} parent=1 // pred_check_branch
      %14 = sbr.rel (0) target = $region5
    $region4: #{attention.1} parent=1 // pred_region
      %s16 = ssub.s32 512, 512
      %17 = vsyncadd [#allocation5], %s16
      %s18 = sshll.u32 [#allocation4], 4
      %s19 = int_to_ptr.vmem [resolvable:$true] %s18
      %24 = dma.hbm_to_vmem [thread:$0]  %s1, 512, %s19, [#allocation5], 128, 128, 8
    $region5: #{attention.1} parent=1 // pred_fallthru
      _
    // Predicated region
    $region6: #{attention.1} parent=1 // pred_check
      _
    $region7: #{attention.1} parent=1 // pred_check_branch
      %26 = sbr.rel (0) target = $region9
    $region8: #{attention.1} parent=1 // pred_region
      %s28 = ssub.s32 512, 512
      %29 = vsyncadd [#allocation8], %s28
      %s30 = sshll.u32 [#allocation7], 4
      %s31 = int_to_ptr.vmem [resolvable:$true] %s30
      %36 = dma.hbm_to_vmem [thread:$0]  %s2, 512, %s31, [#allocation8], 128, 128, 8
    $region9: #{attention.1} parent=1 // pred_fallthru
      _
    // Predicated region
    $region10: #{attention.1} parent=1 // pred_check
      _
    $region11: #{attention.1} parent=1 // pred_check_branch
      %38 = sbr.rel (0) target = $region13
    $region12: #{attention.1} parent=1 // pred_region
      %s40 = ssub.s32 512, 512
      %41 = vsyncadd [#allocation8], %s40
      %s42 = sshll.u32 [#allocation9], 4
      %s43 = int_to_ptr.vmem [resolvable:$true] %s42
      %48 = dma.hbm_to_vmem [thread:$0]  %s3, 512, %s43, [#allocation8], 128, 128, 8
    $region13: #{attention.1} parent=1 // pred_fallthru
      _
    // Predicated region
    $region14: #{attention.1} parent=1 // pred_check
      _
    $region15: #{attention.1} parent=1 // pred_check_branch
      %50 = sbr.rel (0) target = $region17
    $region16: #{attention.1} parent=1 // pred_region
      %51 = dma.done [#allocation5], 512
    $region17: #{attention.1} parent=1 // pred_fallthru
      _
    // Predicated region
    $region18: #{attention.1} parent=1 // pred_check
      _
    $region19: #{attention.1} parent=1 // pred_check_branch
      %53 = sbr.rel (0) target = $region21
    $region20: #{attention.1} parent=1 // pred_region
      %54 = dma.done [#allocation8], 512
    $region21: #{attention.1} parent=1 // pred_fallthru
      _
    // Predicated region
    $region22: #{attention.1} parent=1 // pred_check
      _
    $region23: #{attention.1} parent=1 // pred_check_branch
      %56 = sbr.rel (0) target = $region25
    $region24: #{attention.1} parent=1 // pred_region
      %57 = dma.done [#allocation8], 512
    $region25: #{attention.1} parent=1 // pred_fallthru
      _
    %v58 = vld [vmem:[#allocation4] sm:$0xff]
    %v59 = vld [vmem:[#allocation4 + $0x8] sm:$0xff]
    %v60 = vld [vmem:[#allocation4 + $0x10] sm:$0xff]
    %v61 = vld [vmem:[#allocation4 + $0x18] sm:$0xff]
    %v62 = vmul.f32 %v58, 2.3784142
    %v63 = vmul.f32 %v59, 2.3784142
    %v64 = vmul.f32 %v60, 2.3784142
    %v65 = vmul.f32 %v61, 2.3784142
    %v66 = vld [vmem:[#allocation7] sm:$0xff]
    %v67 = vld [vmem:[#allocation7 + $0x8] sm:$0xff]
    %v68 = vld [vmem:[#allocation7 + $0x10] sm:$0xff]
    %v69 = vld [vmem:[#allocation7 + $0x18] sm:$0xff]
    %v70 = vld [vmem:[#allocation9] sm:$0xff]
    %v71 = vld [vmem:[#allocation9 + $0x8] sm:$0xff]
    %v72 = vld [vmem:[#allocation9 + $0x10] sm:$0xff]
    %v73 = vld [vmem:[#allocation9 + $0x18] sm:$0xff]
    %vm74 = vcmask 261120
    %v76 = vsel %vm74, %v62, 0
    %v79 = vsel %vm74, %v66, 0
    %81 = vmatprep.subr.mxu0 0.0
    %82 = vmatpush1.xpose.msra.mxu0 %v79
    %83 = vmatprep.subr.mxu0 0.0
    %84 = vmatpush1.xpose.msra.mxu0 0.0
    %85 = vmatprep.subr.mxu0 0.0
    %86 = vmatpush1.xpose.msra.mxu0 0.0
    %87 = vmatprep.subr.mxu0 0.0
    %88 = vmatpush1.xpose.msra.mxu0 0.0
    %89 = vmatprep.subr.mxu0 0.0
    %90 = vmatpush1.xpose.msra.mxu0 0.0
    %91 = vmatprep.subr.mxu0 0.0
    %92 = vmatpush1.xpose.msra.mxu0 0.0
    %93 = vmatprep.subr.mxu0 0.0
    %94 = vmatpush1.xpose.msra.mxu0 0.0
    %95 = vmatprep.subr.mxu0 0.0
    %96 = vmatpush1.xpose.msra.mxu0 0.0
    %97 = vmatprep.subr.mxu0 0.0
    %98 = vmatpush1.xpose.msra.mxu0 0.0
    %99 = vmatprep.subr.mxu0 0.0
    %100 = vmatpush1.xpose.msra.mxu0 0.0
    %101 = vmatprep.subr.mxu0 0.0
    %102 = vmatpush1.xpose.msra.mxu0 0.0
    %103 = vmatprep.subr.mxu0 0.0
    %104 = vmatpush1.xpose.msra.mxu0 0.0
    %105 = vmatprep.subr.mxu0 0.0
    %106 = vmatpush1.xpose.msra.mxu0 0.0
    %107 = vmatprep.subr.mxu0 0.0
    %108 = vmatpush1.xpose.msra.mxu0 0.0
    %109 = vmatprep.subr.mxu0 0.0
    %110 = vmatpush1.xpose.msra.mxu0 0.0
    %111 = vmatprep.subr.mxu0 0.0
    %112 = vmatpush1.xpose.msra.mxu0 0.0
    %113 = vmatprep.subr.mxu0 0.0
    %114 = vmatpush1.xpose.msra.mxu0 0.0
    %115 = vmatprep.subr.mxu0 0.0
    %116 = vmatpush1.xpose.msra.mxu0 0.0
    %117 = vmatprep.subr.mxu0 0.0
    %118 = vmatpush1.xpose.msra.mxu0 0.0
    %119 = vmatprep.subr.mxu0 0.0
    %120 = vmatpush1.xpose.msra.mxu0 0.0
    %121 = vmatprep.subr.mxu0 0.0
    %122 = vmatpush1.xpose.msra.mxu0 0.0
    %123 = vmatprep.subr.mxu0 0.0
    %124 = vmatpush1.xpose.msra.mxu0 0.0
    %125 = vmatprep.subr.mxu0 0.0
    %126 = vmatpush1.xpose.msra.mxu0 0.0
    %127 = vmatprep.subr.mxu0 0.0
    %128 = vmatpush1.xpose.msra.mxu0 0.0
    %129 = vmatprep.subr.mxu0 0.0
    %130 = vmatpush1.xpose.msra.mxu0 0.0
    %131 = vmatprep.subr.mxu0 0.0
    %132 = vmatpush1.xpose.msra.mxu0 0.0
    %133 = vmatprep.subr.mxu0 0.0
    %134 = vmatpush1.xpose.msra.mxu0 0.0
    %135 = vmatprep.subr.mxu0 0.0
    %136 = vmatpush1.xpose.msra.mxu0 0.0
    %137 = vmatprep.subr.mxu0 0.0
    %138 = vmatpush1.xpose.msra.mxu0 0.0
    %139 = vmatprep.subr.mxu0 0.0
    %140 = vmatpush1.xpose.msra.mxu0 0.0
    %141 = vmatprep.subr.mxu0 0.0
    %142 = vmatpush1.xpose.msra.mxu0 0.0
    %143 = vmatprep.subr.mxu0 0.0
    %144 = vmatpush1.xpose.msra.mxu0 0.0
    %145 = vmatprep.mubr.f32.mxu0 0.0
    %146 = vmatmul.mubr.f32.gmra.mrb[0].mxu0 %v76
    %v147 = vpop.f32.mrb[0].mxu0
    %v148 = vadd.f32 0.0, %v147
    %v149 = vpop.f32.mrb[0].mxu0
    %150 = vdwg.mxu0
    %v152 = vsel %vm74, %v63, 0
    %v155 = vsel %vm74, %v67, 0
    %157 = vmatprep.subr.mxu0 0.0
    %158 = vmatpush1.xpose.msra.mxu0 %v155
    %159 = vmatprep.subr.mxu0 0.0
    %160 = vmatpush1.xpose.msra.mxu0 0.0
    %161 = vmatprep.subr.mxu0 0.0
    %162 = vmatpush1.xpose.msra.mxu0 0.0
    %163 = vmatprep.subr.mxu0 0.0
    %164 = vmatpush1.xpose.msra.mxu0 0.0
    %165 = vmatprep.subr.mxu0 0.0
    %166 = vmatpush1.xpose.msra.mxu0 0.0
    %167 = vmatprep.subr.mxu0 0.0
    %168 = vmatpush1.xpose.msra.mxu0 0.0
    %169 = vmatprep.subr.mxu0 0.0
    %170 = vmatpush1.xpose.msra.mxu0 0.0
    %171 = vmatprep.subr.mxu0 0.0
    %172 = vmatpush1.xpose.msra.mxu0 0.0
    %173 = vmatprep.subr.mxu0 0.0
    %174 = vmatpush1.xpose.msra.mxu0 0.0
    %175 = vmatprep.subr.mxu0 0.0
    %176 = vmatpush1.xpose.msra.mxu0 0.0
    %177 = vmatprep.subr.mxu0 0.0
    %178 = vmatpush1.xpose.msra.mxu0 0.0
    %179 = vmatprep.subr.mxu0 0.0
    %180 = vmatpush1.xpose.msra.mxu0 0.0
    %181 = vmatprep.subr.mxu0 0.0
    %182 = vmatpush1.xpose.msra.mxu0 0.0
    %183 = vmatprep.subr.mxu0 0.0
    %184 = vmatpush1.xpose.msra.mxu0 0.0
    %185 = vmatprep.subr.mxu0 0.0
    %186 = vmatpush1.xpose.msra.mxu0 0.0
    %187 = vmatprep.subr.mxu0 0.0
    %188 = vmatpush1.xpose.msra.mxu0 0.0
    %189 = vmatprep.subr.mxu0 0.0
    %190 = vmatpush1.xpose.msra.mxu0 0.0
    %191 = vmatprep.subr.mxu0 0.0
    %192 = vmatpush1.xpose.msra.mxu0 0.0
    %193 = vmatprep.subr.mxu0 0.0
    %194 = vmatpush1.xpose.msra.mxu0 0.0
    %195 = vmatprep.subr.mxu0 0.0
    %196 = vmatpush1.xpose.msra.mxu0 0.0
    %197 = vmatprep.subr.mxu0 0.0
    %198 = vmatpush1.xpose.msra.mxu0 0.0
    %199 = vmatprep.subr.mxu0 0.0
    %200 = vmatpush1.xpose.msra.mxu0 0.0
    %201 = vmatprep.subr.mxu0 0.0
    %202 = vmatpush1.xpose.msra.mxu0 0.0
    %203 = vmatprep.subr.mxu0 0.0
    %204 = vmatpush1.xpose.msra.mxu0 0.0
    %205 = vmatprep.subr.mxu0 0.0
    %206 = vmatpush1.xpose.msra.mxu0 0.0
    %207 = vmatprep.subr.mxu0 0.0
    %208 = vmatpush1.xpose.msra.mxu0 0.0
    %209 = vmatprep.subr.mxu0 0.0
    %210 = vmatpush1.xpose.msra.mxu0 0.0
    %211 = vmatprep.subr.mxu0 0.0
    %212 = vmatpush1.xpose.msra.mxu0 0.0
    %213 = vmatprep.subr.mxu0 0.0
    %214 = vmatpush1.xpose.msra.mxu0 0.0
    %215 = vmatprep.subr.mxu0 0.0
    %216 = vmatpush1.xpose.msra.mxu0 0.0
    %217 = vmatprep.subr.mxu0 0.0
    %218 = vmatpush1.xpose.msra.mxu0 0.0
    %219 = vmatprep.subr.mxu0 0.0
    %220 = vmatpush1.xpose.msra.mxu0 0.0
    %221 = vmatprep.mubr.f32.mxu0 0.0
    %222 = vmatmul.mubr.f32.gmra.mrb[0].mxu0 %v152
    %v223 = vpop.f32.mrb[0].mxu0
    %v224 = vadd.f32 0.0, %v223
    %v225 = vpop.f32.mrb[0].mxu0
    %226 = vdwg.mxu0
    %v228 = vsel %vm74, %v64, 0
    %v231 = vsel %vm74, %v68, 0
    %233 = vmatprep.subr.mxu0 0.0
    %234 = vmatpush1.xpose.msra.mxu0 %v231
    %235 = vmatprep.subr.mxu0 0.0
    %236 = vmatpush1.xpose.msra.mxu0 0.0
    %237 = vmatprep.subr.mxu0 0.0
    %238 = vmatpush1.xpose.msra.mxu0 0.0
    %239 = vmatprep.subr.mxu0 0.0
    %240 = vmatpush1.xpose.msra.mxu0 0.0
    %241 = vmatprep.subr.mxu0 0.0
    %242 = vmatpush1.xpose.msra.mxu0 0.0
    %243 = vmatprep.subr.mxu0 0.0
    %244 = vmatpush1.xpose.msra.mxu0 0.0
    %245 = vmatprep.subr.mxu0 0.0
    %246 = vmatpush1.xpose.msra.mxu0 0.0
    %247 = vmatprep.subr.mxu0 0.0
    %248 = vmatpush1.xpose.msra.mxu0 0.0
    %249 = vmatprep.subr.mxu0 0.0
    %250 = vmatpush1.xpose.msra.mxu0 0.0
    %251 = vmatprep.subr.mxu0 0.0
    %252 = vmatpush1.xpose.msra.mxu0 0.0
    %253 = vmatprep.subr.mxu0 0.0
    %254 = vmatpush1.xpose.msra.mxu0 0.0
    %255 = vmatprep.subr.mxu0 0.0
    %256 = vmatpush1.xpose.msra.mxu0 0.0
    %257 = vmatprep.subr.mxu0 0.0
    %258 = vmatpush1.xpose.msra.mxu0 0.0
    %259 = vmatprep.subr.mxu0 0.0
    %260 = vmatpush1.xpose.msra.mxu0 0.0
    %261 = vmatprep.subr.mxu0 0.0
    %262 = vmatpush1.xpose.msra.mxu0 0.0
    %263 = vmatprep.subr.mxu0 0.0
    %264 = vmatpush1.xpose.msra.mxu0 0.0
    %265 = vmatprep.subr.mxu0 0.0
    %266 = vmatpush1.xpose.msra.mxu0 0.0
    %267 = vmatprep.subr.mxu0 0.0
    %268 = vmatpush1.xpose.msra.mxu0 0.0
    %269 = vmatprep.subr.mxu0 0.0
    %270 = vmatpush1.xpose.msra.mxu0 0.0
    %271 = vmatprep.subr.mxu0 0.0
    %272 = vmatpush1.xpose.msra.mxu0 0.0
    %273 = vmatprep.subr.mxu0 0.0
    %274 = vmatpush1.xpose.msra.mxu0 0.0
    %275 = vmatprep.subr.mxu0 0.0
    %276 = vmatpush1.xpose.msra.mxu0 0.0
    %277 = vmatprep.subr.mxu0 0.0
    %278 = vmatpush1.xpose.msra.mxu0 0.0
    %279 = vmatprep.subr.mxu0 0.0
    %280 = vmatpush1.xpose.msra.mxu0 0.0
    %281 = vmatprep.subr.mxu0 0.0
    %282 = vmatpush1.xpose.msra.mxu0 0.0
    %283 = vmatprep.subr.mxu0 0.0
    %284 = vmatpush1.xpose.msra.mxu0 0.0
    %285 = vmatprep.subr.mxu0 0.0
    %286 = vmatpush1.xpose.msra.mxu0 0.0
    %287 = vmatprep.subr.mxu0 0.0
    %288 = vmatpush1.xpose.msra.mxu0 0.0
    %289 = vmatprep.subr.mxu0 0.0
    %290 = vmatpush1.xpose.msra.mxu0 0.0
    %291 = vmatprep.subr.mxu0 0.0
    %292 = vmatpush1.xpose.msra.mxu0 0.0
    %293 = vmatprep.subr.mxu0 0.0
    %294 = vmatpush1.xpose.msra.mxu0 0.0
    %295 = vmatprep.subr.mxu0 0.0
    %296 = vmatpush1.xpose.msra.mxu0 0.0
    %297 = vmatprep.mubr.f32.mxu0 0.0
    %298 = vmatmul.mubr.f32.gmra.mrb[0].mxu0 %v228
    %v299 = vpop.f32.mrb[0].mxu0
    %v300 = vadd.f32 0.0, %v299
    %v301 = vpop.f32.mrb[0].mxu0
    %302 = vdwg.mxu0
    %v304 = vsel %vm74, %v65, 0
    %v307 = vsel %vm74, %v69, 0
    %309 = vmatprep.subr.mxu0 0.0
    %310 = vmatpush1.xpose.msra.mxu0 %v307
    %311 = vmatprep.subr.mxu0 0.0
    %312 = vmatpush1.xpose.msra.mxu0 0.0
    %313 = vmatprep.subr.mxu0 0.0
    %314 = vmatpush1.xpose.msra.mxu0 0.0
    %315 = vmatprep.subr.mxu0 0.0
    %316 = vmatpush1.xpose.msra.mxu0 0.0
    %317 = vmatprep.subr.mxu0 0.0
    %318 = vmatpush1.xpose.msra.mxu0 0.0
    %319 = vmatprep.subr.mxu0 0.0
    %320 = vmatpush1.xpose.msra.mxu0 0.0
    %321 = vmatprep.subr.mxu0 0.0
    %322 = vmatpush1.xpose.msra.mxu0 0.0
    %323 = vmatprep.subr.mxu0 0.0
    %324 = vmatpush1.xpose.msra.mxu0 0.0
    %325 = vmatprep.subr.mxu0 0.0
    %326 = vmatpush1.xpose.msra.mxu0 0.0
    %327 = vmatprep.subr.mxu0 0.0
    %328 = vmatpush1.xpose.msra.mxu0 0.0
    %329 = vmatprep.subr.mxu0 0.0
    %330 = vmatpush1.xpose.msra.mxu0 0.0
    %331 = vmatprep.subr.mxu0 0.0
    %332 = vmatpush1.xpose.msra.mxu0 0.0
    %333 = vmatprep.subr.mxu0 0.0
    %334 = vmatpush1.xpose.msra.mxu0 0.0
    %335 = vmatprep.subr.mxu0 0.0
    %336 = vmatpush1.xpose.msra.mxu0 0.0
    %337 = vmatprep.subr.mxu0 0.0
    %338 = vmatpush1.xpose.msra.mxu0 0.0
    %339 = vmatprep.subr.mxu0 0.0
    %340 = vmatpush1.xpose.msra.mxu0 0.0
    %341 = vmatprep.subr.mxu0 0.0
    %342 = vmatpush1.xpose.msra.mxu0 0.0
    %343 = vmatprep.subr.mxu0 0.0
    %344 = vmatpush1.xpose.msra.mxu0 0.0
    %345 = vmatprep.subr.mxu0 0.0
    %346 = vmatpush1.xpose.msra.mxu0 0.0
    %347 = vmatprep.subr.mxu0 0.0
    %348 = vmatpush1.xpose.msra.mxu0 0.0
    %349 = vmatprep.subr.mxu0 0.0
    %350 = vmatpush1.xpose.msra.mxu0 0.0
    %351 = vmatprep.subr.mxu0 0.0
    %352 = vmatpush1.xpose.msra.mxu0 0.0
    %353 = vmatprep.subr.mxu0 0.0
    %354 = vmatpush1.xpose.msra.mxu0 0.0
    %355 = vmatprep.subr.mxu0 0.0
    %356 = vmatpush1.xpose.msra.mxu0 0.0
    %357 = vmatprep.subr.mxu0 0.0
    %358 = vmatpush1.xpose.msra.mxu0 0.0
    %359 = vmatprep.subr.mxu0 0.0
    %360 = vmatpush1.xpose.msra.mxu0 0.0
    %361 = vmatprep.subr.mxu0 0.0
    %362 = vmatpush1.xpose.msra.mxu0 0.0
    %363 = vmatprep.subr.mxu0 0.0
    %364 = vmatpush1.xpose.msra.mxu0 0.0
    %365 = vmatprep.subr.mxu0 0.0
    %366 = vmatpush1.xpose.msra.mxu0 0.0
    %367 = vmatprep.subr.mxu0 0.0
    %368 = vmatpush1.xpose.msra.mxu0 0.0
    %369 = vmatprep.subr.mxu0 0.0
    %370 = vmatpush1.xpose.msra.mxu0 0.0
    %371 = vmatprep.subr.mxu0 0.0
    %372 = vmatpush1.xpose.msra.mxu0 0.0
    %373 = vmatprep.mubr.f32.mxu0 0.0
    %374 = vmatmul.mubr.f32.gmra.mrb[0].mxu0 %v304
    %v375 = vpop.f32.mrb[0].mxu0
    %v376 = vadd.f32 0.0, %v375
    %v377 = vpop.f32.mrb[0].mxu0
    %378 = vdwg.mxu0
    %vm379 = vcmask 64512
    %v380 = vsel %vm379, %v148, -inf
    %381 = vmax.xlane.f32.xlu0 %v380
    %v382 = vpop.xlane.xlu0 %381
    %v383 = vsel %vm379, %v224, -inf
    %384 = vmax.xlane.f32.xlu0 %v383
    %v385 = vpop.xlane.xlu0 %384
    %v386 = vsel %vm379, %v300, -inf
    %387 = vmax.xlane.f32.xlu0 %v386
    %v388 = vpop.xlane.xlu0 %387
    %v389 = vsel %vm379, %v376, -inf
    %390 = vmax.xlane.f32.xlu0 %v389
    %v391 = vpop.xlane.xlu0 %390
    %v392 = vsub.f32 %v148, %v382
    %v393 = vsub.f32 %v224, %v385
    %v394 = vsub.f32 %v300, %v388
    %v395 = vsub.f32 %v376, %v391
    %v396 = vmul.f32 %v392, 1.442695
    %v397 = vpow.pop %v396
    %v398 = vmul.f32 %v393, 1.442695
    %v399 = vpow.pop %v398
    %v400 = vmul.f32 %v394, 1.442695
    %v401 = vpow.pop %v400
    %v402 = vmul.f32 %v395, 1.442695
    %v403 = vpow.pop %v402
    %v404 = vsel %vm379, %v397, 0.0
    %405 = vadd.xlane.f32.xlu0 %v404
    %v406 = vpop.xlane.xlu0 %405
    %v407 = vsel %vm379, %v399, 0.0
    %408 = vadd.xlane.f32.xlu0 %v407
    %v409 = vpop.xlane.xlu0 %408
    %v410 = vsel %vm379, %v401, 0.0
    %411 = vadd.xlane.f32.xlu0 %v410
    %v412 = vpop.xlane.xlu0 %411
    %v413 = vsel %vm379, %v403, 0.0
    %414 = vadd.xlane.f32.xlu0 %v413
    %v415 = vpop.xlane.xlu0 %414
    %v416 = vrcp.pop %v406
    %v417 = vrcp.pop %v409
    %v418 = vrcp.pop %v412
    %v419 = vrcp.pop %v415
    %v420 = vmul.f32 %v416, 1.1111112
    %v421 = vmul.f32 %v417, 1.1111112
    %v422 = vmul.f32 %v418, 1.1111112
    %v423 = vmul.f32 %v419, 1.1111112
    %s424 = smul.u32 0, 4
    %v425 = vlaneseq
    %v426 = vshrl.u32 %v425, 7
    %v427 = vlaneseq
    %v428 = vand.u32 %v427, 127
    %v429 = vstv %s424
    %v430 = vadd.s32 %v429, 1
    %v431 = vadd.s32 %v429, 2
    %v432 = vadd.s32 %v429, 3
    %v433 = vmul.u32 %v429, 8
    %v434 = vmul.u32 %v430, 8
    %v435 = vmul.u32 %v431, 8
    %v436 = vmul.u32 %v432, 8
    %v437 = vadd.s32 %v433, %v426
    %v438 = vadd.s32 %v434, %v426
    %v439 = vadd.s32 %v435, %v426
    %v440 = vadd.s32 %v436, %v426
    %v441 = vmul.u32 %v437, 8
    %v442 = vmul.u32 %v438, 8
    %v443 = vmul.u32 %v439, 8
    %v444 = vmul.u32 %v440, 8
    %v445 = vadd.s32 %v441, %v428
    %v446 = vadd.s32 %v442, %v428
    %v447 = vadd.s32 %v443, %v428
    %v448 = vadd.s32 %v444, %v428
    %s449 = sld [smem:[#allocation3]]
    %v450 = vmul.u32 %v445, 2654435769
    %v451 = vmul.u32 %v446, 2654435769
    %v452 = vmul.u32 %v447, 2654435769
    %v453 = vmul.u32 %v448, 2654435769
    %s454 = smul.u32 %s449, 2146121005
    %v455 = vstv %s454
    %v456 = vadd.s32 %v450, %v455
    %v457 = vadd.s32 %v451, %v455
    %v458 = vadd.s32 %v452, %v455
    %v459 = vadd.s32 %v453, %v455
    %v460 = vshrl.u32 %v456, 16
    %v461 = vshrl.u32 %v457, 16
    %v462 = vshrl.u32 %v458, 16
    %v463 = vshrl.u32 %v459, 16
    %v464 = vxor.u32 %v456, %v460
    %v465 = vxor.u32 %v457, %v461
    %v466 = vxor.u32 %v458, %v462
    %v467 = vxor.u32 %v459, %v463
    %v468 = vmul.u32 %v464, 2246822507
    %v469 = vmul.u32 %v465, 2246822507
    %v470 = vmul.u32 %v466, 2246822507
    %v471 = vmul.u32 %v467, 2246822507
    %v472 = vshrl.u32 %v468, 13
    %v473 = vshrl.u32 %v469, 13
    %v474 = vshrl.u32 %v470, 13
    %v475 = vshrl.u32 %v471, 13
    %v476 = vxor.u32 %v468, %v472
    %v477 = vxor.u32 %v469, %v473
    %v478 = vxor.u32 %v470, %v474
    %v479 = vxor.u32 %v471, %v475
    %v480 = vmul.u32 %v476, 3266489909
    %v481 = vmul.u32 %v477, 3266489909
    %v482 = vmul.u32 %v478, 3266489909
    %v483 = vmul.u32 %v479, 3266489909
    %v484 = vshrl.u32 %v480, 16
    %v485 = vshrl.u32 %v481, 16
    %v486 = vshrl.u32 %v482, 16
    %v487 = vshrl.u32 %v483, 16
    %v488 = vxor.u32 %v480, %v484
    %v489 = vxor.u32 %v481, %v485
    %v490 = vxor.u32 %v482, %v486
    %v491 = vxor.u32 %v483, %v487
    %vm492 = vcmp.ge.u32.totalorder %v488, 429496730
    %vm493 = vcmp.ge.u32.totalorder %v489, 429496730
    %vm494 = vcmp.ge.u32.totalorder %v490, 429496730
    %vm495 = vcmp.ge.u32.totalorder %v491, 429496730
    %v496 = vmul.f32 %v397, %v420
    %v497 = vmul.f32 %v399, %v421
    %v498 = vmul.f32 %v401, %v422
    %v499 = vmul.f32 %v403, %v423
    %v500 = vsel %vm492, %v496, 0.0
    %v501 = vsel %vm493, %v497, 0.0
    %v502 = vsel %vm494, %v498, 0.0
    %v503 = vsel %vm495, %v499, 0.0
    %v505 = vsel %vm379, %v500, 0
    %507 = vmatprep.subr.mxu0 0.0
    %508 = vmatpush1.msra.mxu0 %v70
    %509 = vmatprep.subr.mxu0 0.0
    %510 = vmatpush1.msra.mxu0 0.0
    %511 = vmatprep.subr.mxu0 0.0
    %512 = vmatpush1.msra.mxu0 0.0
    %513 = vmatprep.subr.mxu0 0.0
    %514 = vmatpush1.msra.mxu0 0.0
    %515 = vmatprep.subr.mxu0 0.0
    %516 = vmatpush1.msra.mxu0 0.0
    %517 = vmatprep.subr.mxu0 0.0
    %518 = vmatpush1.msra.mxu0 0.0
    %519 = vmatprep.subr.mxu0 0.0
    %520 = vmatpush1.msra.mxu0 0.0
    %521 = vmatprep.subr.mxu0 0.0
    %522 = vmatpush1.msra.mxu0 0.0
    %523 = vmatprep.subr.mxu0 0.0
    %524 = vmatpush1.msra.mxu0 0.0
    %525 = vmatprep.subr.mxu0 0.0
    %526 = vmatpush1.msra.mxu0 0.0
    %527 = vmatprep.subr.mxu0 0.0
    %528 = vmatpush1.msra.mxu0 0.0
    %529 = vmatprep.subr.mxu0 0.0
    %530 = vmatpush1.msra.mxu0 0.0
    %531 = vmatprep.subr.mxu0 0.0
    %532 = vmatpush1.msra.mxu0 0.0
    %533 = vmatprep.subr.mxu0 0.0
    %534 = vmatpush1.msra.mxu0 0.0
    %535 = vmatprep.subr.mxu0 0.0
    %536 = vmatpush1.msra.mxu0 0.0
    %537 = vmatprep.subr.mxu0 0.0
    %538 = vmatpush1.msra.mxu0 0.0
    %539 = vmatprep.subr.mxu0 0.0
    %540 = vmatpush1.msra.mxu0 0.0
    %541 = vmatprep.subr.mxu0 0.0
    %542 = vmatpush1.msra.mxu0 0.0
    %543 = vmatprep.subr.mxu0 0.0
    %544 = vmatpush1.msra.mxu0 0.0
    %545 = vmatprep.subr.mxu0 0.0
    %546 = vmatpush1.msra.mxu0 0.0
    %547 = vmatprep.subr.mxu0 0.0
    %548 = vmatpush1.msra.mxu0 0.0
    %549 = vmatprep.subr.mxu0 0.0
    %550 = vmatpush1.msra.mxu0 0.0
    %551 = vmatprep.subr.mxu0 0.0
    %552 = vmatpush1.msra.mxu0 0.0
    %553 = vmatprep.subr.mxu0 0.0
    %554 = vmatpush1.msra.mxu0 0.0
    %555 = vmatprep.subr.mxu0 0.0
    %556 = vmatpush1.msra.mxu0 0.0
    %557 = vmatprep.subr.mxu0 0.0
    %558 = vmatpush1.msra.mxu0 0.0
    %559 = vmatprep.subr.mxu0 0.0
    %560 = vmatpush1.msra.mxu0 0.0
    %561 = vmatprep.subr.mxu0 0.0
    %562 = vmatpush1.msra.mxu0 0.0
    %563 = vmatprep.subr.mxu0 0.0
    %564 = vmatpush1.msra.mxu0 0.0
    %565 = vmatprep.subr.mxu0 0.0
    %566 = vmatpush1.msra.mxu0 0.0
    %567 = vmatprep.subr.mxu0 0.0
    %568 = vmatpush1.msra.mxu0 0.0
    %569 = vmatprep.subr.mxu0 0.0
    %570 = vmatpush1.msra.mxu0 0.0
    %571 = vmatprep.mubr.f32.mxu0 0.0
    %572 = vmatmul.mubr.f32.gmra.mrb[0].mxu0 %v505
    %v573 = vpop.f32.mrb[0].mxu0
    %v574 = vadd.f32 0.0, %v573
    %v575 = vpop.f32.mrb[0].mxu0
    %576 = vdwg.mxu0
    %v578 = vsel %vm379, %v501, 0
    %580 = vmatprep.subr.mxu0 0.0
    %581 = vmatpush1.msra.mxu0 %v71
    %582 = vmatprep.subr.mxu0 0.0
    %583 = vmatpush1.msra.mxu0 0.0
    %584 = vmatprep.subr.mxu0 0.0
    %585 = vmatpush1.msra.mxu0 0.0
    %586 = vmatprep.subr.mxu0 0.0
    %587 = vmatpush1.msra.mxu0 0.0
    %588 = vmatprep.subr.mxu0 0.0
    %589 = vmatpush1.msra.mxu0 0.0
    %590 = vmatprep.subr.mxu0 0.0
    %591 = vmatpush1.msra.mxu0 0.0
    %592 = vmatprep.subr.mxu0 0.0
    %593 = vmatpush1.msra.mxu0 0.0
    %594 = vmatprep.subr.mxu0 0.0
    %595 = vmatpush1.msra.mxu0 0.0
    %596 = vmatprep.subr.mxu0 0.0
    %597 = vmatpush1.msra.mxu0 0.0
    %598 = vmatprep.subr.mxu0 0.0
    %599 = vmatpush1.msra.mxu0 0.0
    %600 = vmatprep.subr.mxu0 0.0
    %601 = vmatpush1.msra.mxu0 0.0
    %602 = vmatprep.subr.mxu0 0.0
    %603 = vmatpush1.msra.mxu0 0.0
    %604 = vmatprep.subr.mxu0 0.0
    %605 = vmatpush1.msra.mxu0 0.0
    %606 = vmatprep.subr.mxu0 0.0
    %607 = vmatpush1.msra.mxu0 0.0
    %608 = vmatprep.subr.mxu0 0.0
    %609 = vmatpush1.msra.mxu0 0.0
    %610 = vmatprep.subr.mxu0 0.0
    %611 = vmatpush1.msra.mxu0 0.0
    %612 = vmatprep.subr.mxu0 0.0
    %613 = vmatpush1.msra.mxu0 0.0
    %614 = vmatprep.subr.mxu0 0.0
    %615 = vmatpush1.msra.mxu0 0.0
    %616 = vmatprep.subr.mxu0 0.0
    %617 = vmatpush1.msra.mxu0 0.0
    %618 = vmatprep.subr.mxu0 0.0
    %619 = vmatpush1.msra.mxu0 0.0
    %620 = vmatprep.subr.mxu0 0.0
    %621 = vmatpush1.msra.mxu0 0.0
    %622 = vmatprep.subr.mxu0 0.0
    %623 = vmatpush1.msra.mxu0 0.0
    %624 = vmatprep.subr.mxu0 0.0
    %625 = vmatpush1.msra.mxu0 0.0
    %626 = vmatprep.subr.mxu0 0.0
    %627 = vmatpush1.msra.mxu0 0.0
    %628 = vmatprep.subr.mxu0 0.0
    %629 = vmatpush1.msra.mxu0 0.0
    %630 = vmatprep.subr.mxu0 0.0
    %631 = vmatpush1.msra.mxu0 0.0
    %632 = vmatprep.subr.mxu0 0.0
    %633 = vmatpush1.msra.mxu0 0.0
    %634 = vmatprep.subr.mxu0 0.0
    %635 = vmatpush1.msra.mxu0 0.0
    %636 = vmatprep.subr.mxu0 0.0
    %637 = vmatpush1.msra.mxu0 0.0
    %638 = vmatprep.subr.mxu0 0.0
    %639 = vmatpush1.msra.mxu0 0.0
    %640 = vmatprep.subr.mxu0 0.0
    %641 = vmatpush1.msra.mxu0 0.0
    %642 = vmatprep.subr.mxu0 0.0
    %643 = vmatpush1.msra.mxu0 0.0
    %644 = vmatprep.mubr.f32.mxu0 0.0
    %645 = vmatmul.mubr.f32.gmra.mrb[0].mxu0 %v578
    %v646 = vpop.f32.mrb[0].mxu0
    %v647 = vadd.f32 0.0, %v646
    %v648 = vpop.f32.mrb[0].mxu0
    %649 = vdwg.mxu0
    %v651 = vsel %vm379, %v502, 0
    %653 = vmatprep.subr.mxu0 0.0
    %654 = vmatpush1.msra.mxu0 %v72
    %655 = vmatprep.subr.mxu0 0.0
    %656 = vmatpush1.msra.mxu0 0.0
    %657 = vmatprep.subr.mxu0 0.0
    %658 = vmatpush1.msra.mxu0 0.0
    %659 = vmatprep.subr.mxu0 0.0
    %660 = vmatpush1.msra.mxu0 0.0
    %661 = vmatprep.subr.mxu0 0.0
    %662 = vmatpush1.msra.mxu0 0.0
    %663 = vmatprep.subr.mxu0 0.0
    %664 = vmatpush1.msra.mxu0 0.0
    %665 = vmatprep.subr.mxu0 0.0
    %666 = vmatpush1.msra.mxu0 0.0
    %667 = vmatprep.subr.mxu0 0.0
    %668 = vmatpush1.msra.mxu0 0.0
    %669 = vmatprep.subr.mxu0 0.0
    %670 = vmatpush1.msra.mxu0 0.0
    %671 = vmatprep.subr.mxu0 0.0
    %672 = vmatpush1.msra.mxu0 0.0
    %673 = vmatprep.subr.mxu0 0.0
    %674 = vmatpush1.msra.mxu0 0.0
    %675 = vmatprep.subr.mxu0 0.0
    %676 = vmatpush1.msra.mxu0 0.0
    %677 = vmatprep.subr.mxu0 0.0
    %678 = vmatpush1.msra.mxu0 0.0
    %679 = vmatprep.subr.mxu0 0.0
    %680 = vmatpush1.msra.mxu0 0.0
    %681 = vmatprep.subr.mxu0 0.0
    %682 = vmatpush1.msra.mxu0 0.0
    %683 = vmatprep.subr.mxu0 0.0
    %684 = vmatpush1.msra.mxu0 0.0
    %685 = vmatprep.subr.mxu0 0.0
    %686 = vmatpush1.msra.mxu0 0.0
    %687 = vmatprep.subr.mxu0 0.0
    %688 = vmatpush1.msra.mxu0 0.0
    %689 = vmatprep.subr.mxu0 0.0
    %690 = vmatpush1.msra.mxu0 0.0
    %691 = vmatprep.subr.mxu0 0.0
    %692 = vmatpush1.msra.mxu0 0.0
    %693 = vmatprep.subr.mxu0 0.0
    %694 = vmatpush1.msra.mxu0 0.0
    %695 = vmatprep.subr.mxu0 0.0
    %696 = vmatpush1.msra.mxu0 0.0
    %697 = vmatprep.subr.mxu0 0.0
    %698 = vmatpush1.msra.mxu0 0.0
    %699 = vmatprep.subr.mxu0 0.0
    %700 = vmatpush1.msra.mxu0 0.0
    %701 = vmatprep.subr.mxu0 0.0
    %702 = vmatpush1.msra.mxu0 0.0
    %703 = vmatprep.subr.mxu0 0.0
    %704 = vmatpush1.msra.mxu0 0.0
    %705 = vmatprep.subr.mxu0 0.0
    %706 = vmatpush1.msra.mxu0 0.0
    %707 = vmatprep.subr.mxu0 0.0
    %708 = vmatpush1.msra.mxu0 0.0
    %709 = vmatprep.subr.mxu0 0.0
    %710 = vmatpush1.msra.mxu0 0.0
    %711 = vmatprep.subr.mxu0 0.0
    %712 = vmatpush1.msra.mxu0 0.0
    %713 = vmatprep.subr.mxu0 0.0
    %714 = vmatpush1.msra.mxu0 0.0
    %715 = vmatprep.subr.mxu0 0.0
    %716 = vmatpush1.msra.mxu0 0.0
    %717 = vmatprep.mubr.f32.mxu0 0.0
    %718 = vmatmul.mubr.f32.gmra.mrb[0].mxu0 %v651
    %v719 = vpop.f32.mrb[0].mxu0
    %v720 = vadd.f32 0.0, %v719
    %v721 = vpop.f32.mrb[0].mxu0
    %722 = vdwg.mxu0
    %v724 = vsel %vm379, %v503, 0
    %726 = vmatprep.subr.mxu0 0.0
    %727 = vmatpush1.msra.mxu0 %v73
    %728 = vmatprep.subr.mxu0 0.0
    %729 = vmatpush1.msra.mxu0 0.0
    %730 = vmatprep.subr.mxu0 0.0
    %731 = vmatpush1.msra.mxu0 0.0
    %732 = vmatprep.subr.mxu0 0.0
    %733 = vmatpush1.msra.mxu0 0.0
    %734 = vmatprep.subr.mxu0 0.0
    %735 = vmatpush1.msra.mxu0 0.0
    %736 = vmatprep.subr.mxu0 0.0
    %737 = vmatpush1.msra.mxu0 0.0
    %738 = vmatprep.subr.mxu0 0.0
    %739 = vmatpush1.msra.mxu0 0.0
    %740 = vmatprep.subr.mxu0 0.0
    %741 = vmatpush1.msra.mxu0 0.0
    %742 = vmatprep.subr.mxu0 0.0
    %743 = vmatpush1.msra.mxu0 0.0
    %744 = vmatprep.subr.mxu0 0.0
    %745 = vmatpush1.msra.mxu0 0.0
    %746 = vmatprep.subr.mxu0 0.0
    %747 = vmatpush1.msra.mxu0 0.0
    %748 = vmatprep.subr.mxu0 0.0
    %749 = vmatpush1.msra.mxu0 0.0
    %750 = vmatprep.subr.mxu0 0.0
    %751 = vmatpush1.msra.mxu0 0.0
    %752 = vmatprep.subr.mxu0 0.0
    %753 = vmatpush1.msra.mxu0 0.0
    %754 = vmatprep.subr.mxu0 0.0
    %755 = vmatpush1.msra.mxu0 0.0
    %756 = vmatprep.subr.mxu0 0.0
    %757 = vmatpush1.msra.mxu0 0.0
    %758 = vmatprep.subr.mxu0 0.0
    %759 = vmatpush1.msra.mxu0 0.0
    %760 = vmatprep.subr.mxu0 0.0
    %761 = vmatpush1.msra.mxu0 0.0
    %762 = vmatprep.subr.mxu0 0.0
    %763 = vmatpush1.msra.mxu0 0.0
    %764 = vmatprep.subr.mxu0 0.0
    %765 = vmatpush1.msra.mxu0 0.0
    %766 = vmatprep.subr.mxu0 0.0
    %767 = vmatpush1.msra.mxu0 0.0
    %768 = vmatprep.subr.mxu0 0.0
    %769 = vmatpush1.msra.mxu0 0.0
    %770 = vmatprep.subr.mxu0 0.0
    %771 = vmatpush1.msra.mxu0 0.0
    %772 = vmatprep.subr.mxu0 0.0
    %773 = vmatpush1.msra.mxu0 0.0
    %774 = vmatprep.subr.mxu0 0.0
    %775 = vmatpush1.msra.mxu0 0.0
    %776 = vmatprep.subr.mxu0 0.0
    %777 = vmatpush1.msra.mxu0 0.0
    %778 = vmatprep.subr.mxu0 0.0
    %779 = vmatpush1.msra.mxu0 0.0
    %780 = vmatprep.subr.mxu0 0.0
    %781 = vmatpush1.msra.mxu0 0.0
    %782 = vmatprep.subr.mxu0 0.0
    %783 = vmatpush1.msra.mxu0 0.0
    %784 = vmatprep.subr.mxu0 0.0
    %785 = vmatpush1.msra.mxu0 0.0
    %786 = vmatprep.subr.mxu0 0.0
    %787 = vmatpush1.msra.mxu0 0.0
    %788 = vmatprep.subr.mxu0 0.0
    %789 = vmatpush1.msra.mxu0 0.0
    %790 = vmatprep.mubr.f32.mxu0 0.0
    %791 = vmatmul.mubr.f32.gmra.mrb[0].mxu0 %v724
    %v792 = vpop.f32.mrb[0].mxu0
    %v793 = vadd.f32 0.0, %v792
    %v794 = vpop.f32.mrb[0].mxu0
    %795 = vdwg.mxu0
    %796 = vst.msk [vmem:[#allocation10] sm:$0xff] %vm74, %v574
    %797 = vst.msk [vmem:[#allocation10 + $0x8] sm:$0xff] %vm74, %v647
    %798 = vst.msk [vmem:[#allocation10 + $0x10] sm:$0xff] %vm74, %v720
    %799 = vst.msk [vmem:[#allocation10 + $0x18] sm:$0xff] %vm74, %v793
    // Predicated region
    $region26: #{attention.1} parent=1 // pred_check
      _
    $region27: #{attention.1} parent=1 // pred_check_branch
      %801 = sbr.rel (0) target = $region29
    $region28: #{attention.1} parent=1 // pred_region
      %s803 = ssub.s32 512, 512
      %804 = vsyncadd [#allocation6], %s803
      %s805 = sshll.u32 [#allocation10], 4
      %s806 = int_to_ptr.vmem [resolvable:$true] %s805
      %811 = dma.vmem_to_hbm [thread:$0]  %s806, 512, %s4, [#allocation6], 128, 128, 8
    $region29: #{attention.1} parent=1 // pred_fallthru
      _
    // Predicated region
    $region30: #{attention.1} parent=1 // pred_check
      _
    $region31: #{attention.1} parent=1 // pred_check_branch
      %813 = sbr.rel (0) target = $region33
    $region32: #{attention.1} parent=1 // pred_region
      %814 = dma.done [#allocation6], 512
    $region33: #{attention.1} parent=1 // pred_fallthru
      _
    %815 = vsyncpa [#allocation5], 1
    %816 = vsyncpa [#allocation8], 1
    %817 = vsyncpa [#allocation6], 1

</llo_original>
